<compile_context>
chip_gen: v5e
topology: v5e:2x2
jax: 0.10.0
libtpu: 0.0.40
codegen_flags: <defaults>
</compile_context>

<pallas_src>
import functools

import jax
import jax.numpy as jnp
import numpy as np
from jax.experimental import pallas as pl
from jax.experimental.pallas import tpu as pltpu

_EPS = 1e-5
_INV_SQRT2 = 0.7071067811865475
_SQRT_2_OVER_PI = 0.7978845608028654
_LANE = 128


def _block_kernel(x_ref, time_ref, win_ref, bin_ref, wout_ref, bout_ref, o_ref,
                  *, channels, inv_hw, hw_valid, hw_pad, use_vpu_conv, fast_math):
    C = channels
    x = x_ref[...].astype(jnp.float32)         # (C, HW_pad)
    time = time_ref[...].astype(jnp.float32)   # (C, 1)
    win = win_ref[...]                         # already in compute dtype (cast hoisted)
    bin_ = bin_ref[...]                        # f32 (C, 1)
    wout = wout_ref[...]
    bout = bout_ref[...]

    # (C,C) identity mask used to transpose tiny per-channel stat vectors.
    eye = (jax.lax.broadcasted_iota(jnp.int32, (C, C), 0)
           == jax.lax.broadcasted_iota(jnp.int32, (C, C), 1))

    def col_to_row(col):
        # (C,1) -> (1,C) without relying on Mosaic reshape/transpose support:
        # broadcast down the lanes, mask to the diagonal, reduce over sublanes.
        return jnp.sum(jnp.where(eye, col, 0.0), axis=0, keepdims=True)

    def gelu(v):
        if fast_math:
            # tanh approximation: transcendental goes to the (otherwise idle) EUP slot.
            return 0.5 * v * (1.0 + jnp.tanh(_SQRT_2_OVER_PI * (v + 0.044715 * v * v * v)))
        # torch.nn.GELU() default: exact erf formulation.
        return 0.5 * v * (1.0 + jax.lax.erf(v * _INV_SQRT2))

    def tree_sum(terms):
        while len(terms) > 1:
            nxt = [terms[i] + terms[i + 1] for i in range(0, len(terms) - 1, 2)]
            if len(terms) % 2:
                nxt.append(terms[-1])
            terms = nxt
        return terms[0]

    def norm_conv(v, w, b):
        # InstanceNorm (affine=False) + 1x1 conv with rstd folded into the weight
        # columns and the mean folded into the bias:
        #   W @ ((v - mu) * rstd) + b == W_eff @ v + (b - W_eff @ mu),  W_eff = W * rstd^T
        # so the (C, HW) slab feeds the contraction directly (no full-slab scale pass).
        # NOTE: one-pass variance can drift vs. two-pass for |mean| >> std inputs.
        s = jnp.sum(v, axis=-1, keepdims=True)
        ss = jnp.sum(v * v, axis=-1, keepdims=True)
        mu = s * inv_hw                                     # (C, 1)
        var = jnp.maximum(ss * inv_hw - mu * mu, 0.0)       # biased variance
        rstd = jax.lax.rsqrt(var + _EPS)                    # (C, 1)
        rstd_row = col_to_row(rstd)                         # (1, C)
        mu_row = col_to_row(mu)                             # (1, C)
        w_eff = w.astype(jnp.float32) * rstd_row            # (C, C), O(C^2)
        b_eff = b - jnp.sum(w_eff * mu_row, axis=-1, keepdims=True)  # == b - W_eff @ mu
        if use_vpu_conv:
            # Tiny C: unrolled broadcast-multiply-adds on the VPU (tree-shaped for
            # ILP) instead of a <1%-utilized MXU op with push/pop latency.
            terms = [w_eff[:, c:c + 1] * v[c:c + 1, :] for c in range(C)]
            return tree_sum(terms) + b_eff
        if fast_math:
            # bf16 MXU operands (native MXU dtype on v6e/v7x), f32 accumulation.
            return jnp.dot(w_eff.astype(jnp.bfloat16), v.astype(jnp.bfloat16),
                           preferred_element_type=jnp.float32) + b_eff
        return jnp.dot(w_eff, v, preferred_element_type=jnp.float32) + b_eff

    # h = gelu(in_conv(in_norm(x))) + time_proj(t)
    h = gelu(norm_conv(x, win, bin_)) + time
    if hw_pad != hw_valid:
        # Re-zero padded lanes: x's pad is zero (stats exact), but conv bias + time
        # make h's pad nonzero, which would corrupt the second norm's statistics.
        lane = jax.lax.broadcasted_iota(jnp.int32, (C, hw_pad), 1)
        h = jnp.where(lane < hw_valid, h, 0.0)
    # out = h + gelu(out_conv(out_norm(h)))   (padded lanes are sliced off by the wrapper)
    o_ref[...] = (h + gelu(norm_conv(h, wout, bout))).astype(o_ref.dtype)


def _vmem_capacity_bytes():
    try:
        return int(pltpu.get_tpu_info().vmem_capacity_bytes)
    except Exception:
        return 64 << 20  # conservative lower bound (v7x per-TensorCore VMEM)


@functools.partial(jax.jit, static_argnames=("fast_math",))
def block_forward(x_nchw, t, wt, win, bin_, wout, bout, *, fast_math=False):
    B, C, H, W = x_nchw.shape
    HW = H * W
    HW_pad = max(_LANE, -(-HW // _LANE) * _LANE)  # lane-dense (unmasked vst, clean DMA)

    x = x_nchw.reshape(B, C, HW)
    if HW_pad != HW:
        x = jnp.pad(x, ((0, 0), (0, 0), (0, HW_pad - HW)))

    # Hoisted time projection: tiny (B,T)x(T,C) GEMM done once by XLA.
    time = (t @ wt.T).astype(jnp.float32).reshape(B, C, 1)

    # Hoisted parameter casts (the weight blocks are resident across grid steps).
    w_dtype = jnp.bfloat16 if fast_math else jnp.float32
    win_c = win.astype(w_dtype)
    wout_c = wout.astype(w_dtype)
    bin_c = bin_.reshape(C, 1).astype(jnp.float32)
    bout_c = bout.reshape(C, 1).astype(jnp.float32)

    # VMEM budget clamped to the actual chip (v7x has only 64 MiB per core).
    slab = C * HW_pad * 4
    weights = 2 * C * C * jnp.dtype(w_dtype).itemsize + 2 * C * 4
    needed = 8 * slab + 4 * weights + (2 << 20)
    cap = _vmem_capacity_bytes()
    vmem_budget = int(max(min(max(needed, 32 << 20), cap - (16 << 20)), 4 << 20))
    # TODO(synk): if 8*slab exceeds the per-core VMEM budget (very large C*HW, esp.
    # v7x), restructure into a stats pass + HW-tiled apply pass per norm instead of
    # whole-(C,HW) blocks.

    cost = pl.CostEstimate(
        flops=int(B * (4 * C * C * HW_pad + 30 * C * HW_pad)),
        transcendentals=int(B * 2 * C * HW_pad),
        bytes_accessed=int(B * 2 * slab + 2 * C * C * 4 + B * C * 4),
    )

    kernel = functools.partial(
        _block_kernel, channels=C, inv_hw=1.0 / HW, hw_valid=HW, hw_pad=HW_pad,
        use_vpu_conv=(C <= 8), fast_math=fast_math)

    out = pl.pallas_call(
        kernel,
        out_shape=jax.ShapeDtypeStruct((B, C, HW_pad), x.dtype),
        grid_spec=pltpu.PrefetchScalarGridSpec(
            num_scalar_prefetch=0,
            grid=(B,),  # "parallel" over batch: B >= 2 keeps both v7x TensorCores busy
            in_specs=[
                pl.BlockSpec((None, C, HW_pad), lambda b: (b, 0, 0)),  # x (batch squeezed)
                pl.BlockSpec((None, C, 1), lambda b: (b, 0, 0)),       # time_proj(t)
                pl.BlockSpec((C, C), lambda b: (0, 0)),                # in_conv weight (resident)
                pl.BlockSpec((C, 1), lambda b: (0, 0)),                # in_conv bias
                pl.BlockSpec((C, C), lambda b: (0, 0)),                # out_conv weight (resident)
                pl.BlockSpec((C, 1), lambda b: (0, 0)),                # out_conv bias
            ],
            out_specs=pl.BlockSpec((None, C, HW_pad), lambda b: (b, 0, 0)),
        ),
        compiler_params=pltpu.CompilerParams(
            dimension_semantics=("parallel",),
            vmem_limit_bytes=vmem_budget),
        cost_estimate=cost,
    )(x, time, win_c, bin_c, wout_c, bout_c)

    if HW_pad != HW:
        out = out[..., :HW]
    return out.reshape(B, C, H, W)


def _reference(x, t, wt, win, bin_, wout, bout):
    # Pure-JAX reference of the PyTorch forward (NCHW).
    def inorm(v):
        mu = jnp.mean(v, axis=(2, 3), keepdims=True)
        var = jnp.mean((v - mu) ** 2, axis=(2, 3), keepdims=True)
        return (v - mu) * jax.lax.rsqrt(var + _EPS)

    def gelu(v):
        return 0.5 * v * (1.0 + jax.lax.erf(v * _INV_SQRT2))

    def conv1x1(v, w, b):
        return (jnp.einsum('bchw,oc->bohw', v, w, precision=jax.lax.Precision.HIGHEST)
                + b.reshape(1, -1, 1, 1))

    time = (t @ wt.T)[:, :, None, None]
    h = gelu(conv1x1(inorm(x), win, bin_.reshape(-1))) + time
    return h + gelu(conv1x1(inorm(h), wout, bout.reshape(-1)))


if __name__ == "__main__":
    T = 32
    key = jax.random.PRNGKey(0)

    def make_inputs(B, C, H, W, k):
        kx, kt, k1, k2, k3, k4, k5 = jax.random.split(k, 7)
        x = jax.random.normal(kx, (B, C, H, W), dtype=jnp.float32)
        t = jax.random.normal(kt, (B, T), dtype=jnp.float32)
        wt = jax.random.normal(k1, (C, T), dtype=jnp.float32) * 0.1     # time_proj (no bias)
        win = jax.random.normal(k2, (C, C), dtype=jnp.float32) * 0.2    # in_conv 1x1 weight
        bin_ = jax.random.normal(k3, (C, 1), dtype=jnp.float32) * 0.05  # in_conv bias
        wout = jax.random.normal(k4, (C, C), dtype=jnp.float32) * 0.2   # out_conv 1x1 weight
        bout = jax.random.normal(k5, (C, 1), dtype=jnp.float32) * 0.05  # out_conv bias
        return x, t, wt, win, bin_, wout, bout

    # Config 1: small C -> VPU conv path; HW = 256 is already lane-dense.
    args1 = make_inputs(4, 4, 16, 16, jax.random.fold_in(key, 1))
    y1 = jax.block_until_ready(block_forward(*args1))
    np.testing.assert_allclose(np.asarray(y1), np.asarray(_reference(*args1)),
                               rtol=1e-5, atol=1e-5)

    # Config 2: MXU conv path + non-128-multiple spatial (HW=100 -> padded to 128).
    # Looser tolerance: the in-kernel f32 MXU contraction may use default (reduced)
    # matmul precision.
    args2 = make_inputs(2, 16, 10, 10, jax.random.fold_in(key, 2))
    y2 = jax.block_until_ready(block_forward(*args2))
    np.testing.assert_allclose(np.asarray(y2), np.asarray(_reference(*args2)),
                               rtol=2e-2, atol=2e-2)

    # Config 3: fast-math path (bf16 MXU operands + tanh-approx GELU) -- numerics
    # intentionally deviate from the f32 / exact-erf PyTorch default.
    y3 = jax.block_until_ready(block_forward(*args2, fast_math=True))
    np.testing.assert_allclose(np.asarray(y3), np.asarray(_reference(*args2)),
                               rtol=1e-1, atol=1e-1)

    print("KERNEL_OK")
</pallas_src>

<mosaic_0001>
module attributes {stable_mosaic.version = 11 : i64} {
  func.func @_block_kernel(%arg0: i32, %arg1: memref<1x4x256xf32, #tpu.memory_space<vmem>>, %arg2: memref<1x4x1xf32, #tpu.memory_space<vmem>>, %arg3: memref<4x4xf32, #tpu.memory_space<vmem>>, %arg4: memref<4x1xf32, #tpu.memory_space<vmem>>, %arg5: memref<4x4xf32, #tpu.memory_space<vmem>>, %arg6: memref<4x1xf32, #tpu.memory_space<vmem>>, %arg7: memref<1x4x256xf32, #tpu.memory_space<vmem>>) attributes {dimension_semantics = [#tpu.dimension_semantics<parallel>], iteration_bounds = array<i64: 4>, scalar_prefetch = 0 : i64, scratch_operands = 0 : i64, tpu.core_type = #tpu.core_type<tc>, window_params = [{transform_indices = @transform_0, window_bounds = array<i64: 1, 4, 256>}, {transform_indices = @transform_1, window_bounds = array<i64: 1, 4, 1>}, {pipeline_mode = #tpu.pipeline_mode<synchronous>, transform_indices = @transform_2, window_bounds = array<i64: 4, 4>}, {pipeline_mode = #tpu.pipeline_mode<synchronous>, transform_indices = @transform_3, window_bounds = array<i64: 4, 1>}, {pipeline_mode = #tpu.pipeline_mode<synchronous>, transform_indices = @transform_4, window_bounds = array<i64: 4, 4>}, {pipeline_mode = #tpu.pipeline_mode<synchronous>, transform_indices = @transform_5, window_bounds = array<i64: 4, 1>}, {transform_indices = @transform_6, window_bounds = array<i64: 1, 4, 256>}]} {
    %c0 = arith.constant 0 : index
    %c0_0 = arith.constant 0 : index
    %c0_1 = arith.constant 0 : index
    %0 = vector.load %arg1[%c0, %c0_0, %c0_1] : memref<1x4x256xf32, #tpu.memory_space<vmem>>, vector<1x4x256xf32>
    %1 = vector.shape_cast %0 : vector<1x4x256xf32> to vector<4x256xf32>
    %c0_2 = arith.constant 0 : index
    %c0_3 = arith.constant 0 : index
    %c0_4 = arith.constant 0 : index
    %2 = vector.load %arg2[%c0_2, %c0_3, %c0_4] : memref<1x4x1xf32, #tpu.memory_space<vmem>>, vector<1x4x1xf32>
    %3 = vector.shape_cast %2 : vector<1x4x1xf32> to vector<4x1xf32>
    %c0_5 = arith.constant 0 : index
    %c0_6 = arith.constant 0 : index
    %4 = vector.load %arg3[%c0_5, %c0_6] : memref<4x4xf32, #tpu.memory_space<vmem>>, vector<4x4xf32>
    %c0_7 = arith.constant 0 : index
    %c0_8 = arith.constant 0 : index
    %5 = vector.load %arg4[%c0_7, %c0_8] : memref<4x1xf32, #tpu.memory_space<vmem>>, vector<4x1xf32>
    %c0_9 = arith.constant 0 : index
    %c0_10 = arith.constant 0 : index
    %6 = vector.load %arg5[%c0_9, %c0_10] : memref<4x4xf32, #tpu.memory_space<vmem>>, vector<4x4xf32>
    %c0_11 = arith.constant 0 : index
    %c0_12 = arith.constant 0 : index
    %7 = vector.load %arg6[%c0_11, %c0_12] : memref<4x1xf32, #tpu.memory_space<vmem>>, vector<4x1xf32>
    %8 = tpu.iota {dimensions = array<i32: 0>} : vector<4x4xi32>
    %9 = tpu.iota {dimensions = array<i32: 1>} : vector<4x4xi32>
    %10 = arith.cmpi eq, %8, %9 : vector<4x4xi32>
    %cst = arith.constant dense<0.000000e+00> : vector<4xf32>
    %11 = vector.multi_reduction <add>, %1, %cst [1] : vector<4x256xf32> to vector<4xf32>
    %12 = vector.shape_cast %11 : vector<4xf32> to vector<4x1xf32>
    %13 = arith.mulf %1, %1 : vector<4x256xf32>
    %cst_13 = arith.constant dense<0.000000e+00> : vector<4xf32>
    %14 = vector.multi_reduction <add>, %13, %cst_13 [1] : vector<4x256xf32> to vector<4xf32>
    %15 = vector.shape_cast %14 : vector<4xf32> to vector<4x1xf32>
    %cst_14 = arith.constant 3.906250e-03 : f32
    %16 = vector.broadcast %cst_14 : f32 to vector<4x1xf32>
    %17 = arith.mulf %12, %16 : vector<4x1xf32>
    %cst_15 = arith.constant 3.906250e-03 : f32
    %18 = vector.broadcast %cst_15 : f32 to vector<4x1xf32>
    %19 = arith.mulf %15, %18 : vector<4x1xf32>
    %20 = arith.mulf %17, %17 : vector<4x1xf32>
    %21 = arith.subf %19, %20 : vector<4x1xf32>
    %cst_16 = arith.constant 0.000000e+00 : f32
    %22 = vector.broadcast %cst_16 : f32 to vector<4x1xf32>
    %23 = arith.maximumf %21, %22 : vector<4x1xf32>
    %cst_17 = arith.constant 9.99999974E-6 : f32
    %24 = vector.broadcast %cst_17 : f32 to vector<4x1xf32>
    %25 = arith.addf %23, %24 : vector<4x1xf32>
    %26 = math.rsqrt %25 : vector<4x1xf32>
    %cst_18 = arith.constant 0.000000e+00 : f32
    %27 = vector.shape_cast %26 : vector<4x1xf32> to vector<4x1xf32>
    %28 = vector.broadcast %27 : vector<4x1xf32> to vector<4x4xf32>
    %29 = vector.broadcast %cst_18 : f32 to vector<4x4xf32>
    %30 = arith.select %10, %28, %29 : vector<4x4xi1>, vector<4x4xf32>
    %cst_19 = arith.constant dense<0.000000e+00> : vector<4xf32>
    %31 = vector.multi_reduction <add>, %30, %cst_19 [0] : vector<4x4xf32> to vector<4xf32>
    %32 = vector.shape_cast %31 : vector<4xf32> to vector<1x4xf32>
    %cst_20 = arith.constant 0.000000e+00 : f32
    %33 = vector.shape_cast %17 : vector<4x1xf32> to vector<4x1xf32>
    %34 = vector.broadcast %33 : vector<4x1xf32> to vector<4x4xf32>
    %35 = vector.broadcast %cst_20 : f32 to vector<4x4xf32>
    %36 = arith.select %10, %34, %35 : vector<4x4xi1>, vector<4x4xf32>
    %cst_21 = arith.constant dense<0.000000e+00> : vector<4xf32>
    %37 = vector.multi_reduction <add>, %36, %cst_21 [0] : vector<4x4xf32> to vector<4xf32>
    %38 = vector.shape_cast %37 : vector<4xf32> to vector<1x4xf32>
    %39 = vector.broadcast %32 : vector<1x4xf32> to vector<4x4xf32>
    %40 = arith.mulf %4, %39 : vector<4x4xf32>
    %41 = vector.broadcast %38 : vector<1x4xf32> to vector<4x4xf32>
    %42 = arith.mulf %40, %41 : vector<4x4xf32>
    %cst_22 = arith.constant dense<0.000000e+00> : vector<4xf32>
    %43 = vector.multi_reduction <add>, %42, %cst_22 [1] : vector<4x4xf32> to vector<4xf32>
    %44 = vector.shape_cast %43 : vector<4xf32> to vector<4x1xf32>
    %45 = arith.subf %5, %44 : vector<4x1xf32>
    %46 = vector.extract_strided_slice %40 {offsets = [0, 0], sizes = [4, 1], strides = [1, 1]} : vector<4x4xf32> to vector<4x1xf32>
    %47 = vector.extract_strided_slice %1 {offsets = [0, 0], sizes = [1, 256], strides = [1, 1]} : vector<4x256xf32> to vector<1x256xf32>
    %48 = vector.broadcast %46 : vector<4x1xf32> to vector<4x256xf32>
    %49 = vector.broadcast %47 : vector<1x256xf32> to vector<4x256xf32>
    %50 = arith.mulf %48, %49 : vector<4x256xf32>
    %51 = vector.extract_strided_slice %40 {offsets = [0, 1], sizes = [4, 1], strides = [1, 1]} : vector<4x4xf32> to vector<4x1xf32>
    %52 = vector.extract_strided_slice %1 {offsets = [1, 0], sizes = [1, 256], strides = [1, 1]} : vector<4x256xf32> to vector<1x256xf32>
    %53 = vector.broadcast %51 : vector<4x1xf32> to vector<4x256xf32>
    %54 = vector.broadcast %52 : vector<1x256xf32> to vector<4x256xf32>
    %55 = arith.mulf %53, %54 : vector<4x256xf32>
    %56 = vector.extract_strided_slice %40 {offsets = [0, 2], sizes = [4, 1], strides = [1, 1]} : vector<4x4xf32> to vector<4x1xf32>
    %57 = vector.extract_strided_slice %1 {offsets = [2, 0], sizes = [1, 256], strides = [1, 1]} : vector<4x256xf32> to vector<1x256xf32>
    %58 = vector.broadcast %56 : vector<4x1xf32> to vector<4x256xf32>
    %59 = vector.broadcast %57 : vector<1x256xf32> to vector<4x256xf32>
    %60 = arith.mulf %58, %59 : vector<4x256xf32>
    %61 = vector.extract_strided_slice %40 {offsets = [0, 3], sizes = [4, 1], strides = [1, 1]} : vector<4x4xf32> to vector<4x1xf32>
    %62 = vector.extract_strided_slice %1 {offsets = [3, 0], sizes = [1, 256], strides = [1, 1]} : vector<4x256xf32> to vector<1x256xf32>
    %63 = vector.broadcast %61 : vector<4x1xf32> to vector<4x256xf32>
    %64 = vector.broadcast %62 : vector<1x256xf32> to vector<4x256xf32>
    %65 = arith.mulf %63, %64 : vector<4x256xf32>
    %66 = arith.addf %50, %55 : vector<4x256xf32>
    %67 = arith.addf %60, %65 : vector<4x256xf32>
    %68 = arith.addf %66, %67 : vector<4x256xf32>
    %69 = vector.broadcast %45 : vector<4x1xf32> to vector<4x256xf32>
    %70 = arith.addf %68, %69 : vector<4x256xf32>
    %cst_23 = arith.constant 5.000000e-01 : f32
    %71 = vector.broadcast %cst_23 : f32 to vector<4x256xf32>
    %72 = arith.mulf %71, %70 : vector<4x256xf32>
    %cst_24 = arith.constant 0.707106769 : f32
    %73 = vector.broadcast %cst_24 : f32 to vector<4x256xf32>
    %74 = arith.mulf %70, %73 : vector<4x256xf32>
    %75 = math.erf %74 : vector<4x256xf32>
    %cst_25 = arith.constant 1.000000e+00 : f32
    %76 = vector.broadcast %cst_25 : f32 to vector<4x256xf32>
    %77 = arith.addf %76, %75 : vector<4x256xf32>
    %78 = arith.mulf %72, %77 : vector<4x256xf32>
    %79 = vector.broadcast %3 : vector<4x1xf32> to vector<4x256xf32>
    %80 = arith.addf %78, %79 : vector<4x256xf32>
    %cst_26 = arith.constant dense<0.000000e+00> : vector<4xf32>
    %81 = vector.multi_reduction <add>, %80, %cst_26 [1] : vector<4x256xf32> to vector<4xf32>
    %82 = vector.shape_cast %81 : vector<4xf32> to vector<4x1xf32>
    %83 = arith.mulf %80, %80 : vector<4x256xf32>
    %cst_27 = arith.constant dense<0.000000e+00> : vector<4xf32>
    %84 = vector.multi_reduction <add>, %83, %cst_27 [1] : vector<4x256xf32> to vector<4xf32>
    %85 = vector.shape_cast %84 : vector<4xf32> to vector<4x1xf32>
    %cst_28 = arith.constant 3.906250e-03 : f32
    %86 = vector.broadcast %cst_28 : f32 to vector<4x1xf32>
    %87 = arith.mulf %82, %86 : vector<4x1xf32>
    %cst_29 = arith.constant 3.906250e-03 : f32
    %88 = vector.broadcast %cst_29 : f32 to vector<4x1xf32>
    %89 = arith.mulf %85, %88 : vector<4x1xf32>
    %90 = arith.mulf %87, %87 : vector<4x1xf32>
    %91 = arith.subf %89, %90 : vector<4x1xf32>
    %cst_30 = arith.constant 0.000000e+00 : f32
    %92 = vector.broadcast %cst_30 : f32 to vector<4x1xf32>
    %93 = arith.maximumf %91, %92 : vector<4x1xf32>
    %cst_31 = arith.constant 9.99999974E-6 : f32
    %94 = vector.broadcast %cst_31 : f32 to vector<4x1xf32>
    %95 = arith.addf %93, %94 : vector<4x1xf32>
    %96 = math.rsqrt %95 : vector<4x1xf32>
    %cst_32 = arith.constant 0.000000e+00 : f32
    %97 = vector.shape_cast %96 : vector<4x1xf32> to vector<4x1xf32>
    %98 = vector.broadcast %97 : vector<4x1xf32> to vector<4x4xf32>
    %99 = vector.broadcast %cst_32 : f32 to vector<4x4xf32>
    %100 = arith.select %10, %98, %99 : vector<4x4xi1>, vector<4x4xf32>
    %cst_33 = arith.constant dense<0.000000e+00> : vector<4xf32>
    %101 = vector.multi_reduction <add>, %100, %cst_33 [0] : vector<4x4xf32> to vector<4xf32>
    %102 = vector.shape_cast %101 : vector<4xf32> to vector<1x4xf32>
    %cst_34 = arith.constant 0.000000e+00 : f32
    %103 = vector.shape_cast %87 : vector<4x1xf32> to vector<4x1xf32>
    %104 = vector.broadcast %103 : vector<4x1xf32> to vector<4x4xf32>
    %105 = vector.broadcast %cst_34 : f32 to vector<4x4xf32>
    %106 = arith.select %10, %104, %105 : vector<4x4xi1>, vector<4x4xf32>
    %cst_35 = arith.constant dense<0.000000e+00> : vector<4xf32>
    %107 = vector.multi_reduction <add>, %106, %cst_35 [0] : vector<4x4xf32> to vector<4xf32>
    %108 = vector.shape_cast %107 : vector<4xf32> to vector<1x4xf32>
    %109 = vector.broadcast %102 : vector<1x4xf32> to vector<4x4xf32>
    %110 = arith.mulf %6, %109 : vector<4x4xf32>
    %111 = vector.broadcast %108 : vector<1x4xf32> to vector<4x4xf32>
    %112 = arith.mulf %110, %111 : vector<4x4xf32>
    %cst_36 = arith.constant dense<0.000000e+00> : vector<4xf32>
    %113 = vector.multi_reduction <add>, %112, %cst_36 [1] : vector<4x4xf32> to vector<4xf32>
    %114 = vector.shape_cast %113 : vector<4xf32> to vector<4x1xf32>
    %115 = arith.subf %7, %114 : vector<4x1xf32>
    %116 = vector.extract_strided_slice %110 {offsets = [0, 0], sizes = [4, 1], strides = [1, 1]} : vector<4x4xf32> to vector<4x1xf32>
    %117 = vector.extract_strided_slice %80 {offsets = [0, 0], sizes = [1, 256], strides = [1, 1]} : vector<4x256xf32> to vector<1x256xf32>
    %118 = vector.broadcast %116 : vector<4x1xf32> to vector<4x256xf32>
    %119 = vector.broadcast %117 : vector<1x256xf32> to vector<4x256xf32>
    %120 = arith.mulf %118, %119 : vector<4x256xf32>
    %121 = vector.extract_strided_slice %110 {offsets = [0, 1], sizes = [4, 1], strides = [1, 1]} : vector<4x4xf32> to vector<4x1xf32>
    %122 = vector.extract_strided_slice %80 {offsets = [1, 0], sizes = [1, 256], strides = [1, 1]} : vector<4x256xf32> to vector<1x256xf32>
    %123 = vector.broadcast %121 : vector<4x1xf32> to vector<4x256xf32>
    %124 = vector.broadcast %122 : vector<1x256xf32> to vector<4x256xf32>
    %125 = arith.mulf %123, %124 : vector<4x256xf32>
    %126 = vector.extract_strided_slice %110 {offsets = [0, 2], sizes = [4, 1], strides = [1, 1]} : vector<4x4xf32> to vector<4x1xf32>
    %127 = vector.extract_strided_slice %80 {offsets = [2, 0], sizes = [1, 256], strides = [1, 1]} : vector<4x256xf32> to vector<1x256xf32>
    %128 = vector.broadcast %126 : vector<4x1xf32> to vector<4x256xf32>
    %129 = vector.broadcast %127 : vector<1x256xf32> to vector<4x256xf32>
    %130 = arith.mulf %128, %129 : vector<4x256xf32>
    %131 = vector.extract_strided_slice %110 {offsets = [0, 3], sizes = [4, 1], strides = [1, 1]} : vector<4x4xf32> to vector<4x1xf32>
    %132 = vector.extract_strided_slice %80 {offsets = [3, 0], sizes = [1, 256], strides = [1, 1]} : vector<4x256xf32> to vector<1x256xf32>
    %133 = vector.broadcast %131 : vector<4x1xf32> to vector<4x256xf32>
    %134 = vector.broadcast %132 : vector<1x256xf32> to vector<4x256xf32>
    %135 = arith.mulf %133, %134 : vector<4x256xf32>
    %136 = arith.addf %120, %125 : vector<4x256xf32>
    %137 = arith.addf %130, %135 : vector<4x256xf32>
    %138 = arith.addf %136, %137 : vector<4x256xf32>
    %139 = vector.broadcast %115 : vector<4x1xf32> to vector<4x256xf32>
    %140 = arith.addf %138, %139 : vector<4x256xf32>
    %cst_37 = arith.constant 5.000000e-01 : f32
    %141 = vector.broadcast %cst_37 : f32 to vector<4x256xf32>
    %142 = arith.mulf %141, %140 : vector<4x256xf32>
    %cst_38 = arith.constant 0.707106769 : f32
    %143 = vector.broadcast %cst_38 : f32 to vector<4x256xf32>
    %144 = arith.mulf %140, %143 : vector<4x256xf32>
    %145 = math.erf %144 : vector<4x256xf32>
    %cst_39 = arith.constant 1.000000e+00 : f32
    %146 = vector.broadcast %cst_39 : f32 to vector<4x256xf32>
    %147 = arith.addf %146, %145 : vector<4x256xf32>
    %148 = arith.mulf %142, %147 : vector<4x256xf32>
    %149 = arith.addf %80, %148 : vector<4x256xf32>
    %c0_40 = arith.constant 0 : index
    %c0_41 = arith.constant 0 : index
    %c0_42 = arith.constant 0 : index
    %150 = vector.load %arg7[%c0_40, %c0_41, %c0_42] : memref<1x4x256xf32, #tpu.memory_space<vmem>>, vector<1x4x256xf32>
    %151 = vector.shape_cast %150 : vector<1x4x256xf32> to vector<4x256xf32>
    %152 = vector.shape_cast %149 : vector<4x256xf32> to vector<1x4x256xf32>
    tpu.vector_store %arg7[%c0_40, %c0_41, %c0_42], %152 {strides = array<i32>} : memref<1x4x256xf32, #tpu.memory_space<vmem>>, vector<1x4x256xf32>,
    return
  }
  func.func @transform_0(%arg0: i32) -> (i32, i32, i32) {
    %c0_i32 = arith.constant 0 : i32
    %c0_i32_0 = arith.constant 0 : i32
    %c0_i32_1 = arith.constant 0 : i32
    return %arg0, %c0_i32, %c0_i32_0 : i32, i32, i32
  }
  func.func @transform_1(%arg0: i32) -> (i32, i32, i32) {
    %c0_i32 = arith.constant 0 : i32
    %c0_i32_0 = arith.constant 0 : i32
    %c0_i32_1 = arith.constant 0 : i32
    return %arg0, %c0_i32, %c0_i32_0 : i32, i32, i32
  }
  func.func @transform_2(%arg0: i32) -> (i32, i32) {
    %c0_i32 = arith.constant 0 : i32
    %c0_i32_0 = arith.constant 0 : i32
    %c0_i32_1 = arith.constant 0 : i32
    return %c0_i32, %c0_i32_0 : i32, i32
  }
  func.func @transform_3(%arg0: i32) -> (i32, i32) {
    %c0_i32 = arith.constant 0 : i32
    %c0_i32_0 = arith.constant 0 : i32
    %c0_i32_1 = arith.constant 0 : i32
    return %c0_i32, %c0_i32_0 : i32, i32
  }
  func.func @transform_4(%arg0: i32) -> (i32, i32) {
    %c0_i32 = arith.constant 0 : i32
    %c0_i32_0 = arith.constant 0 : i32
    %c0_i32_1 = arith.constant 0 : i32
    return %c0_i32, %c0_i32_0 : i32, i32
  }
  func.func @transform_5(%arg0: i32) -> (i32, i32) {
    %c0_i32 = arith.constant 0 : i32
    %c0_i32_0 = arith.constant 0 : i32
    %c0_i32_1 = arith.constant 0 : i32
    return %c0_i32, %c0_i32_0 : i32, i32
  }
  func.func @transform_6(%arg0: i32) -> (i32, i32, i32) {
    %c0_i32 = arith.constant 0 : i32
    %c0_i32_0 = arith.constant 0 : i32
    %c0_i32_1 = arith.constant 0 : i32
    return %arg0, %c0_i32, %c0_i32_0 : i32, i32, i32
  }
}

</mosaic_0001>

<llo_original>
// kernel: block_forward.1
$region0: #{block_forward.1}
  #allocation0 [shape = 'u32[]', space=smem, size = 0x4, offset = 0x4, fixed_abs, tag = 'smem constant byte address 0x4 - core index']
  #allocation1 [shape = 'u32[72,128]{1,0:T(1,128)}', space=vmem, size = 0x9000, scoped, tag = 'internal scratch']
  %s0 = inlined_call_operand.vmem [shape: f32[4,4,256], index: 0, kind: input, shape index: {}]
  %s1 = inlined_call_operand.vmem [shape: f32[4,4,1], index: 1, kind: input, shape index: {}]
  %s2 = inlined_call_operand.vmem [shape: f32[4,4], index: 2, kind: input, shape index: {}]
  %s3 = inlined_call_operand.vmem [shape: f32[4,1], index: 3, kind: input, shape index: {}]
  %s4 = inlined_call_operand.vmem [shape: f32[4,4], index: 4, kind: input, shape index: {}]
  %s5 = inlined_call_operand.vmem [shape: f32[4,1], index: 5, kind: input, shape index: {}]
  %s6 = inlined_call_operand.vmem [shape: f32[4,4,256], index: 6, kind: output, shape index: {}]
  %s7 = sld [smem:[#allocation0]]
  $region57: #{block_forward.1} parent=0
    _
  %s9 = ssub.s32 1, %s7
  %s10 = scalar_select 0, %s9, %s7
  loop: start=0, step=1, limit=6
  $region2: #{block_forward.1} parent=0 // loop_pre_header
    _
  $region3: #{block_forward.1} parent=0 // loop_header
    %s12 = sphi 0, %s16
    %p13 = scmp.ge.s32.totalorder %s12, 6
    %s22 = sphi 0, %s24
    %s25 = sphi 0, %s22
    %s26 = sphi 0, %s25
    %s42 = sphi 0, %s26
    %s48 = sphi 0, %s50
    %s51 = sphi 0, %s48
    %s52 = sphi 0, %s51
    %s68 = sphi 0, %s52
    %s72 = sphi 0, %s72
    %s74 = sphi 0, %s72
    %s75 = sphi 0, %s74
    %s89 = sphi 0, %s75
    %s93 = sphi 0, %s93
    %s95 = sphi 0, %s93
    %s96 = sphi 0, %s95
    %s110 = sphi 0, %s96
    %s114 = sphi 0, %s114
    %s116 = sphi 0, %s114
    %s117 = sphi 0, %s116
    %s131 = sphi 0, %s117
    %s135 = sphi 0, %s135
    %s137 = sphi 0, %s135
    %s138 = sphi 0, %s137
    %s152 = sphi 0, %s138
    %s158 = sphi 0, %s160
    %s161 = sphi 0, %s158
    %s162 = sphi 0, %s161
    %s178 = sphi 0, %s162
  $region4: #{block_forward.1} parent=0 // loop_header_branch
    %15 = sbr.rel (%p13) target = $region8
  $region5: #{block_forward.1} parent=0 // loop_body
    %s17 = ssub.s32 %s12, 1
    %s18 = ssub.s32 %s12, 2
    %s19 = sadd.s32 %s12, 1
    %s20 = ssub.s32 %s12, %s19
    %p21 = scmp.eq.s32.totalorder %s20, 0
    %s23 = sadd.s32 %s22, 1
    %s24 = scalar_select %p21, %s22, %s23
    %p27 = pneg %p21
    %p28 = scmp.eq.s32.totalorder %s12, 3
    %p29 = por %p27, %p28
    %p30 = scmp.ne.s32.totalorder %s22, %s25
    %p31 = scmp.eq.s32.totalorder %s12, 0
    %p32 = por %p30, %p31
    %p33 = scmp.ne.s32.totalorder %s22, %s25
    %p34 = scmp.eq.s32.totalorder %s17, 3
    %p35 = por %p33, %p34
    %p36 = scmp.ne.s32.totalorder %s25, %s26
    %p37 = scmp.eq.s32.totalorder %s17, 0
    %p38 = por %p36, %p37
    %p39 = scmp.ne.s32.totalorder %s25, %s26
    %p40 = scmp.eq.s32.totalorder %s18, 3
    %p41 = por %p39, %p40
    %p43 = scmp.ne.s32.totalorder %s26, %s42
    %p44 = scmp.eq.s32.totalorder %s18, 0
    %p45 = por %p43, %p44
    %s46 = ssub.s32 %s12, %s19
    %p47 = scmp.eq.s32.totalorder %s46, 0
    %s49 = sadd.s32 %s48, 1
    %s50 = scalar_select %p47, %s48, %s49
    %p53 = pneg %p47
    %p54 = scmp.eq.s32.totalorder %s12, 3
    %p55 = por %p53, %p54
    %p56 = scmp.ne.s32.totalorder %s48, %s51
    %p57 = scmp.eq.s32.totalorder %s12, 0
    %p58 = por %p56, %p57
    %p59 = scmp.ne.s32.totalorder %s48, %s51
    %p60 = scmp.eq.s32.totalorder %s17, 3
    %p61 = por %p59, %p60
    %p62 = scmp.ne.s32.totalorder %s51, %s52
    %p63 = scmp.eq.s32.totalorder %s17, 0
    %p64 = por %p62, %p63
    %p65 = scmp.ne.s32.totalorder %s51, %s52
    %p66 = scmp.eq.s32.totalorder %s18, 3
    %p67 = por %p65, %p66
    %p69 = scmp.ne.s32.totalorder %s52, %s68
    %p70 = scmp.eq.s32.totalorder %s18, 0
    %p71 = por %p69, %p70
    %s73 = sadd.s32 %s72, 1
    %p76 = scmp.eq.s32.totalorder %s12, 3
    %p77 = scmp.ne.s32.totalorder %s72, %s74
    %p78 = scmp.eq.s32.totalorder %s12, 0
    %p79 = por %p77, %p78
    %p80 = scmp.ne.s32.totalorder %s72, %s74
    %p81 = scmp.eq.s32.totalorder %s17, 3
    %p82 = por %p80, %p81
    %p83 = scmp.ne.s32.totalorder %s74, %s75
    %p84 = scmp.eq.s32.totalorder %s17, 0
    %p85 = por %p83, %p84
    %p86 = scmp.ne.s32.totalorder %s74, %s75
    %p87 = scmp.eq.s32.totalorder %s18, 3
    %p88 = por %p86, %p87
    %p90 = scmp.ne.s32.totalorder %s75, %s89
    %p91 = scmp.eq.s32.totalorder %s18, 0
    %p92 = por %p90, %p91
    %s94 = sadd.s32 %s93, 1
    %p97 = scmp.eq.s32.totalorder %s12, 3
    %p98 = scmp.ne.s32.totalorder %s93, %s95
    %p99 = scmp.eq.s32.totalorder %s12, 0
    %p100 = por %p98, %p99
    %p101 = scmp.ne.s32.totalorder %s93, %s95
    %p102 = scmp.eq.s32.totalorder %s17, 3
    %p103 = por %p101, %p102
    %p104 = scmp.ne.s32.totalorder %s95, %s96
    %p105 = scmp.eq.s32.totalorder %s17, 0
    %p106 = por %p104, %p105
    %p107 = scmp.ne.s32.totalorder %s95, %s96
    %p108 = scmp.eq.s32.totalorder %s18, 3
    %p109 = por %p107, %p108
    %p111 = scmp.ne.s32.totalorder %s96, %s110
    %p112 = scmp.eq.s32.totalorder %s18, 0
    %p113 = por %p111, %p112
    %s115 = sadd.s32 %s114, 1
    %p118 = scmp.eq.s32.totalorder %s12, 3
    %p119 = scmp.ne.s32.totalorder %s114, %s116
    %p120 = scmp.eq.s32.totalorder %s12, 0
    %p121 = por %p119, %p120
    %p122 = scmp.ne.s32.totalorder %s114, %s116
    %p123 = scmp.eq.s32.totalorder %s17, 3
    %p124 = por %p122, %p123
    %p125 = scmp.ne.s32.totalorder %s116, %s117
    %p126 = scmp.eq.s32.totalorder %s17, 0
    %p127 = por %p125, %p126
    %p128 = scmp.ne.s32.totalorder %s116, %s117
    %p129 = scmp.eq.s32.totalorder %s18, 3
    %p130 = por %p128, %p129
    %p132 = scmp.ne.s32.totalorder %s117, %s131
    %p133 = scmp.eq.s32.totalorder %s18, 0
    %p134 = por %p132, %p133
    %s136 = sadd.s32 %s135, 1
    %p139 = scmp.eq.s32.totalorder %s12, 3
    %p140 = scmp.ne.s32.totalorder %s135, %s137
    %p141 = scmp.eq.s32.totalorder %s12, 0
    %p142 = por %p140, %p141
    %p143 = scmp.ne.s32.totalorder %s135, %s137
    %p144 = scmp.eq.s32.totalorder %s17, 3
    %p145 = por %p143, %p144
    %p146 = scmp.ne.s32.totalorder %s137, %s138
    %p147 = scmp.eq.s32.totalorder %s17, 0
    %p148 = por %p146, %p147
    %p149 = scmp.ne.s32.totalorder %s137, %s138
    %p150 = scmp.eq.s32.totalorder %s18, 3
    %p151 = por %p149, %p150
    %p153 = scmp.ne.s32.totalorder %s138, %s152
    %p154 = scmp.eq.s32.totalorder %s18, 0
    %p155 = por %p153, %p154
    %s156 = ssub.s32 %s12, %s19
    %p157 = scmp.eq.s32.totalorder %s156, 0
    %s159 = sadd.s32 %s158, 1
    %s160 = scalar_select %p157, %s158, %s159
    %p163 = pneg %p157
    %p164 = scmp.eq.s32.totalorder %s12, 3
    %p165 = por %p163, %p164
    %p166 = scmp.ne.s32.totalorder %s158, %s161
    %p167 = scmp.eq.s32.totalorder %s12, 0
    %p168 = por %p166, %p167
    %p169 = scmp.ne.s32.totalorder %s158, %s161
    %p170 = scmp.eq.s32.totalorder %s17, 3
    %p171 = por %p169, %p170
    %p172 = scmp.ne.s32.totalorder %s161, %s162
    %p173 = scmp.eq.s32.totalorder %s17, 0
    %p174 = por %p172, %p173
    %p175 = scmp.ne.s32.totalorder %s161, %s162
    %p176 = scmp.eq.s32.totalorder %s18, 3
    %p177 = por %p175, %p176
    %p179 = scmp.ne.s32.totalorder %s162, %s178
    %p180 = scmp.eq.s32.totalorder %s18, 0
    %p181 = por %p179, %p180
    %p182 = scmp.le.s32.totalorder 1, %s12
    %p183 = scmp.lt.s32.totalorder %s12, 5
    %p184 = pnand %p182, %p183
    %p185 = pneg %p184
    // Predicated region
    $region9: #{block_forward.1} parent=5 // pred_check
      _
    $region10: #{block_forward.1} parent=5 // pred_check_branch
      %187 = sbr.rel (%p184) target = $region12
    $region11: #{block_forward.1} parent=5 // pred_region
      %s188 = ssub.s32 %s12, 1
      // Predicated region
      $region13: #{block_forward.1} parent=11 // pred_check
        %p189 = pneg %p85
      $region14: #{block_forward.1} parent=11 // pred_check_branch
        %191 = sbr.rel (%p189) target = $region16
      $region15: #{block_forward.1} parent=11 // pred_region
        _
      $region16: #{block_forward.1} parent=11 // pred_fallthru
        _
      // Predicated region
      $region17: #{block_forward.1} parent=11 // pred_check
        %p192 = pneg %p106
      $region18: #{block_forward.1} parent=11 // pred_check_branch
        %194 = sbr.rel (%p192) target = $region20
      $region19: #{block_forward.1} parent=11 // pred_region
        _
      $region20: #{block_forward.1} parent=11 // pred_fallthru
        _
      // Predicated region
      $region21: #{block_forward.1} parent=11 // pred_check
        %p195 = pneg %p127
      $region22: #{block_forward.1} parent=11 // pred_check_branch
        %197 = sbr.rel (%p195) target = $region24
      $region23: #{block_forward.1} parent=11 // pred_region
        _
      $region24: #{block_forward.1} parent=11 // pred_fallthru
        _
      // Predicated region
      $region25: #{block_forward.1} parent=11 // pred_check
        %p198 = pneg %p148
      $region26: #{block_forward.1} parent=11 // pred_check_branch
        %200 = sbr.rel (%p198) target = $region28
      $region27: #{block_forward.1} parent=11 // pred_region
        _
      $region28: #{block_forward.1} parent=11 // pred_fallthru
        _
    $region12: #{block_forward.1} parent=5 // pred_fallthru
      _
    %p201 = scmp.lt.s32.totalorder %s12, 4
    // Predicated region
    $region29: #{block_forward.1} parent=5 // pred_check
      %p202 = pneg %p201
    $region30: #{block_forward.1} parent=5 // pred_check_branch
      %204 = sbr.rel (%p202) target = $region32
    $region31: #{block_forward.1} parent=5 // pred_region
      // Predicated region
      $region33: #{block_forward.1} parent=31 // pred_check
        %p205 = pneg %p32
      $region34: #{block_forward.1} parent=31 // pred_check_branch
        %207 = sbr.rel (%p205) target = $region36
      $region35: #{block_forward.1} parent=31 // pred_region
        %p208 = scmp.lt.s32.totalorder %s12, 3
        %s209 = scalar_select %p208, %s12, 3
        %s210 = smul.addr %s209, 2
        %s211 = smul.addr %s210, 4
        %s212 = scalar_lea.vmem %s0, %s211
      $region36: #{block_forward.1} parent=31 // pred_fallthru
        _
      // Predicated region
      $region37: #{block_forward.1} parent=31 // pred_check
        %p213 = pneg %p58
      $region38: #{block_forward.1} parent=31 // pred_check_branch
        %215 = sbr.rel (%p213) target = $region40
      $region39: #{block_forward.1} parent=31 // pred_region
        %p216 = scmp.lt.s32.totalorder %s12, 3
        %s217 = scalar_select %p216, %s12, 3
        %s218 = smul.addr %s217, 4
        %s219 = scalar_lea.vmem %s1, %s218
      $region40: #{block_forward.1} parent=31 // pred_fallthru
        _
    $region32: #{block_forward.1} parent=5 // pred_fallthru
      _
    %p220 = scmp.le.s32.totalorder 1, %s12
    %p221 = scmp.lt.s32.totalorder %s12, 5
    %p222 = pnand %p220, %p221
    %p223 = pneg %p222
    // Predicated region
    $region41: #{block_forward.1} parent=5 // pred_check
      _
    $region42: #{block_forward.1} parent=5 // pred_check_branch
      %225 = sbr.rel (%p222) target = $region44
    $region43: #{block_forward.1} parent=5 // pred_region
      %s226 = ssub.s32 %s12, 1
      %p227 = scmp.lt.s32.totalorder %s17, 3
      %s228 = scalar_select %p227, %s17, 3
      %s229 = smul.addr %s228, 2
      %s230 = smul.addr %s229, 4
      %s231 = scalar_lea.vmem %s0, %s230
      %p232 = pneg %p38
      %p233 = pneg %p35
      %p234 = scmp.lt.s32.totalorder %s17, 3
      %s235 = scalar_select %p234, %s17, 3
      %s236 = smul.addr %s235, 4
      %s237 = scalar_lea.vmem %s1, %s236
      %p238 = pneg %p64
      %p239 = pneg %p61
      %p240 = pneg %p85
      %p241 = pneg %p82
      %p242 = pneg %p106
      %p243 = pneg %p103
      %p244 = pneg %p127
      %p245 = pneg %p124
      %p246 = pneg %p148
      %p247 = pneg %p145
      %p248 = pneg %p174
      %p249 = pneg %p171
      %p250 = scmp.lt.s32.totalorder %s17, 3
      %s251 = scalar_select %p250, %s17, 3
      %s252 = smul.addr %s251, 2
      %s253 = smul.addr %s252, 4
      %s254 = scalar_lea.vmem %s6, %s253
      %p255 = scmp.lt.s32.totalorder %s17, 3
      %s256 = scalar_select %p255, %s17, 3
      %s257 = smul.addr %s256, 2
      %s258 = smul.addr %s257, 4
      %s259 = scalar_lea.vmem %s0, %s258
      %p260 = scmp.lt.s32.totalorder %s17, 3
      %s261 = scalar_select %p260, %s17, 3
      %s262 = smul.addr %s261, 4
      %s263 = scalar_lea.vmem %s1, %s262
      %p264 = scmp.lt.s32.totalorder %s17, 3
      %s265 = scalar_select %p264, %s17, 3
      %s266 = smul.addr %s265, 2
      %s267 = smul.addr %s266, 4
      %s268 = scalar_lea.vmem %s6, %s267
      %v269 = vld [vmem:[%s259] sm:$0xff]
      %v270 = vld [vmem:[%s263] sm:$0xf]
      %v271 = vld [vmem:[%s2] sm:$0xf]
      %v272 = vld [vmem:[%s3] sm:$0xf]
      %v273 = vld [vmem:[%s4] sm:$0xf]
      %v274 = vld [vmem:[%s5] sm:$0xf]
      %v275 = vlaneseq
      %v276 = vshrl.u32 %v275, 7
      %v277 = vlaneseq
      %v278 = vand.u32 %v277, 127
      %vm279 = vcmp.eq.s32.totalorder %v276, %v278
      %281 = vst [vmem:[#allocation1] ss:$2 sm:$0xff] %v269
      %v282 = vld.sshfl [vmem:[#allocation1] sm:$0xff pattern:$0x75316420]
      %v283 = vld.sshfl [vmem:[#allocation1 + $0x8] sm:$0xff pattern:$0x75316420]
      %vm286 = vcmask 1043456
      %v287 = vsel %vm286, %v282, 0.0
      %v288 = vsel %vm286, %v283, 0.0
      %v289 = vadd.f32 %v287, %v288
      %290 = vadd.xlane.f32.xlu0 %v289
      %v291 = vpop.xlane.xlu0 %290
      %v292 = vmul.f32 %v269, %v269
      %294 = vst [vmem:[#allocation1] ss:$2 sm:$0xff] %v292
      %v295 = vld.sshfl [vmem:[#allocation1] sm:$0xff pattern:$0x75316420]
      %v296 = vld.sshfl [vmem:[#allocation1 + $0x8] sm:$0xff pattern:$0x75316420]
      %v299 = vsel %vm286, %v295, 0.0
      %v300 = vsel %vm286, %v296, 0.0
      %v301 = vadd.f32 %v299, %v300
      %302 = vadd.xlane.f32.xlu0 %v301
      %v303 = vpop.xlane.xlu0 %302
      %v304 = vmul.f32 %v291, 0.00390625
      %v305 = vmul.f32 %v303, 0.00390625
      %v306 = vmul.f32 %v304, %v304
      %v307 = vsub.f32 %v305, %v306
      %v308 = vmax.f32 %v307, 0.0
      %v309 = vadd.f32 %v308, 1e-05
      %v310 = vrsqrt.pop %v309
      %v311 = vmul.f32 %v310, %v309
      %v312 = vmul.f32 %v311, %v310
      %v313 = vmul.f32 0.5, %v312
      %v314 = vsub.f32 1.5, %v313
      %v315 = vmul.f32 %v310, %v314
      %vm316 = vweird.f32 %v309
      %vm317 = vweird.f32 %v310
      %vm318 = vmor %vm316, %vm317
      %v319 = vsel %vm318, %v310, %v315
      %v320 = vsel %vm279, %v319, 0.0
      %vm321 = vcmask 27648
      %v322 = vsel %vm321, %v320, 0.0
      %v323 = vrot.slane %v322, 4
      %v324 = vadd.f32 %v322, %v323
      %v325 = vrot.slane %v324, 2
      %v326 = vadd.f32 %v324, %v325
      %v327 = vrot.slane %v326, 1
      %v328 = vadd.f32 %v326, %v327
      %v329 = vsel %vm279, %v304, 0.0
      %v330 = vsel %vm321, %v329, 0.0
      %v331 = vrot.slane %v330, 4
      %v332 = vadd.f32 %v330, %v331
      %v333 = vrot.slane %v332, 2
      %v334 = vadd.f32 %v332, %v333
      %v335 = vrot.slane %v334, 1
      %v336 = vadd.f32 %v334, %v335
      %v337 = vmul.f32 %v271, %v328
      %v338 = vmul.f32 %v337, %v336
      %v339 = vsel %vm321, %v338, 0.0
      %340 = vadd.xlane.f32.xlu0 %v339
      %v341 = vpop.xlane.xlu0 %340
      %v342 = vsub.f32 %v272, %v341
      %344 = vset.pattern.permute.xlu0 0
      %345 = vperm.xlu0 %344, %v337
      %v346 = vpop.permute.xlu0 %345
      %v348 = vperm.slane %v269, 0
      %v349 = vperm.slane %v269, 4
      %v352 = vperm.slane %v348, 0
      %v353 = vperm.slane %v349, 0
      %v354 = vmul.f32 %v346, %v352
      %v355 = vmul.f32 %v346, %v353
      %356 = vset.pattern.permute.xlu0 1
      %357 = vperm.xlu0 %356, %v337
      %v358 = vpop.permute.xlu0 %357
      %v360 = vperm.slane %v269, 1
      %v361 = vperm.slane %v269, 5
      %v364 = vperm.slane %v360, 1
      %v365 = vperm.slane %v361, 1
      %v366 = vmul.f32 %v358, %v364
      %v367 = vmul.f32 %v358, %v365
      %368 = vset.pattern.permute.xlu0 2
      %369 = vperm.xlu0 %368, %v337
      %v370 = vpop.permute.xlu0 %369
      %v372 = vperm.slane %v269, 2
      %v373 = vperm.slane %v269, 6
      %v376 = vperm.slane %v372, 2
      %v377 = vperm.slane %v373, 2
      %v378 = vmul.f32 %v370, %v376
      %v379 = vmul.f32 %v370, %v377
      %380 = vset.pattern.permute.xlu0 3
      %381 = vperm.xlu0 %380, %v337
      %v382 = vpop.permute.xlu0 %381
      %v384 = vperm.slane %v269, 3
      %v385 = vperm.slane %v269, 7
      %v388 = vperm.slane %v384, 3
      %v389 = vperm.slane %v385, 3
      %v390 = vmul.f32 %v382, %v388
      %v391 = vmul.f32 %v382, %v389
      %v392 = vadd.f32 %v354, %v366
      %v393 = vadd.f32 %v355, %v367
      %v394 = vadd.f32 %v378, %v390
      %v395 = vadd.f32 %v379, %v391
      %v396 = vadd.f32 %v392, %v394
      %v397 = vadd.f32 %v393, %v395
      %399 = vset.pattern.permute.xlu0 0
      %400 = vperm.xlu0 %399, %v342
      %v401 = vpop.permute.xlu0 %400
      %v403 = vadd.f32 %v396, %v401
      %v404 = vadd.f32 %v397, %v401
      %v405 = vmul.f32 %v403, 0.5
      %v406 = vmul.f32 %v404, 0.5
      %v407 = vmul.f32 %v403, 0.70710677
      %v408 = vmul.f32 %v404, 0.70710677
      %v409 = vmul.f32 %v407, %v407
      %v410 = vmin.f32 16.0, %v409
      %v411 = vmul.f32 %v410, 2.1237322e-06
      %v412 = vadd.f32 %v411, 0.00028619796
      %v413 = vmul.f32 %v410, %v412
      %v414 = vadd.f32 %v413, 0.0036580483
      %v415 = vmul.f32 %v410, %v414
      %v416 = vadd.f32 %v415, 0.05243302
      %v417 = vmul.f32 %v410, %v416
      %v418 = vadd.f32 %v417, 0.18741608
      %v419 = vmul.f32 %v410, %v418
      %v420 = vadd.f32 %v419, 1.1283791
      %v421 = vmul.f32 %v407, %v420
      %v422 = vmul.f32 %v410, 3.8918573e-05
      %v423 = vadd.f32 %v422, 0.001143296
      %v424 = vmul.f32 %v410, %v423
      %v425 = vadd.f32 %v424, 0.014752088
      %v426 = vmul.f32 %v410, %v425
      %v427 = vadd.f32 %v426, 0.112945676
      %v428 = vmul.f32 %v410, %v427
      %v429 = vadd.f32 %v428, 0.4994258
      %v430 = vmul.f32 %v410, %v429
      %v431 = vadd.f32 %v430, 1.0
      %v432 = vrcp.pop %v431
      %v433 = vmul.f32 %v431, %v432
      %v434 = vsub.f32 1.0, %v433
      %v435 = vmul.f32 %v432, %v434
      %v436 = vadd.f32 %v432, %v435
      %vm437 = vweird.f32 %v431
      %vm438 = vweird.f32 %v432
      %vm439 = vmor %vm437, %vm438
      %v440 = vsel %vm439, %v432, %v436
      %v441 = vand.u32 2147483647, %v431
      %vm442 = vcmp.eq.f32.partialorder %v441, 8.507059e+37
      %v443 = vand.u32 %v431, 2147483648
      %v444 = vor.u32 1.1754944e-38, %v443
      %v445 = vsel %vm442, %v444, %v440
      %v446 = vmul.f32 %v421, %v445
      %v447 = vmin.f32 %v446, 1.0
      %v448 = vmax.f32 %v447, -1.0
      %v449 = vmul.f32 %v408, %v408
      %v450 = vmin.f32 16.0, %v449
      %v451 = vmul.f32 %v450, 2.1237322e-06
      %v452 = vadd.f32 %v451, 0.00028619796
      %v453 = vmul.f32 %v450, %v452
      %v454 = vadd.f32 %v453, 0.0036580483
      %v455 = vmul.f32 %v450, %v454
      %v456 = vadd.f32 %v455, 0.05243302
      %v457 = vmul.f32 %v450, %v456
      %v458 = vadd.f32 %v457, 0.18741608
      %v459 = vmul.f32 %v450, %v458
      %v460 = vadd.f32 %v459, 1.1283791
      %v461 = vmul.f32 %v408, %v460
      %v462 = vmul.f32 %v450, 3.8918573e-05
      %v463 = vadd.f32 %v462, 0.001143296
      %v464 = vmul.f32 %v450, %v463
      %v465 = vadd.f32 %v464, 0.014752088
      %v466 = vmul.f32 %v450, %v465
      %v467 = vadd.f32 %v466, 0.112945676
      %v468 = vmul.f32 %v450, %v467
      %v469 = vadd.f32 %v468, 0.4994258
      %v470 = vmul.f32 %v450, %v469
      %v471 = vadd.f32 %v470, 1.0
      %v472 = vrcp.pop %v471
      %v473 = vmul.f32 %v471, %v472
      %v474 = vsub.f32 1.0, %v473
      %v475 = vmul.f32 %v472, %v474
      %v476 = vadd.f32 %v472, %v475
      %vm477 = vweird.f32 %v471
      %vm478 = vweird.f32 %v472
      %vm479 = vmor %vm477, %vm478
      %v480 = vsel %vm479, %v472, %v476
      %v481 = vand.u32 2147483647, %v471
      %vm482 = vcmp.eq.f32.partialorder %v481, 8.507059e+37
      %v483 = vand.u32 %v471, 2147483648
      %v484 = vor.u32 1.1754944e-38, %v483
      %v485 = vsel %vm482, %v484, %v480
      %v486 = vmul.f32 %v461, %v485
      %v487 = vmin.f32 %v486, 1.0
      %v488 = vmax.f32 %v487, -1.0
      %v489 = vadd.f32 %v448, 1.0
      %v490 = vadd.f32 %v488, 1.0
      %v491 = vmul.f32 %v405, %v489
      %v492 = vmul.f32 %v406, %v490
      %494 = vset.pattern.permute.xlu0 0
      %495 = vperm.xlu0 %494, %v270
      %v496 = vpop.permute.xlu0 %495
      %v498 = vadd.f32 %v491, %v496
      %v499 = vadd.f32 %v492, %v496
      %v500 = vsel %vm286, %v498, 0.0
      %v501 = vsel %vm286, %v499, 0.0
      %v502 = vadd.f32 %v500, %v501
      %503 = vadd.xlane.f32.xlu0 %v502
      %v504 = vpop.xlane.xlu0 %503
      %v505 = vmul.f32 %v498, %v498
      %v506 = vmul.f32 %v499, %v499
      %v507 = vsel %vm286, %v505, 0.0
      %v508 = vsel %vm286, %v506, 0.0
      %v509 = vadd.f32 %v507, %v508
      %510 = vadd.xlane.f32.xlu0 %v509
      %v511 = vpop.xlane.xlu0 %510
      %v512 = vmul.f32 %v504, 0.00390625
      %v513 = vmul.f32 %v511, 0.00390625
      %v514 = vmul.f32 %v512, %v512
      %v515 = vsub.f32 %v513, %v514
      %v516 = vmax.f32 %v515, 0.0
      %v517 = vadd.f32 %v516, 1e-05
      %v518 = vrsqrt.pop %v517
      %v519 = vmul.f32 %v518, %v517
      %v520 = vmul.f32 %v519, %v518
      %v521 = vmul.f32 0.5, %v520
      %v522 = vsub.f32 1.5, %v521
      %v523 = vmul.f32 %v518, %v522
      %vm524 = vweird.f32 %v517
      %vm525 = vweird.f32 %v518
      %vm526 = vmor %vm524, %vm525
      %v527 = vsel %vm526, %v518, %v523
      %v528 = vsel %vm279, %v527, 0.0
      %v529 = vsel %vm321, %v528, 0.0
      %v530 = vrot.slane %v529, 4
      %v531 = vadd.f32 %v529, %v530
      %v532 = vrot.slane %v531, 2
      %v533 = vadd.f32 %v531, %v532
      %v534 = vrot.slane %v533, 1
      %v535 = vadd.f32 %v533, %v534
      %v536 = vsel %vm279, %v512, 0.0
      %v537 = vsel %vm321, %v536, 0.0
      %v538 = vrot.slane %v537, 4
      %v539 = vadd.f32 %v537, %v538
      %v540 = vrot.slane %v539, 2
      %v541 = vadd.f32 %v539, %v540
      %v542 = vrot.slane %v541, 1
      %v543 = vadd.f32 %v541, %v542
      %v544 = vmul.f32 %v273, %v535
      %v545 = vmul.f32 %v544, %v543
      %v546 = vsel %vm321, %v545, 0.0
      %547 = vadd.xlane.f32.xlu0 %v546
      %v548 = vpop.xlane.xlu0 %547
      %v549 = vsub.f32 %v274, %v548
      %551 = vset.pattern.permute.xlu0 0
      %552 = vperm.xlu0 %551, %v544
      %v553 = vpop.permute.xlu0 %552
      %v555 = vperm.slane %v498, 0
      %v556 = vperm.slane %v499, 0
      %v557 = vmul.f32 %v553, %v555
      %v558 = vmul.f32 %v553, %v556
      %559 = vset.pattern.permute.xlu0 1
      %560 = vperm.xlu0 %559, %v544
      %v561 = vpop.permute.xlu0 %560
      %v563 = vperm.slane %v498, 1
      %v564 = vperm.slane %v499, 1
      %v565 = vmul.f32 %v561, %v563
      %v566 = vmul.f32 %v561, %v564
      %567 = vset.pattern.permute.xlu0 2
      %568 = vperm.xlu0 %567, %v544
      %v569 = vpop.permute.xlu0 %568
      %v571 = vperm.slane %v498, 2
      %v572 = vperm.slane %v499, 2
      %v573 = vmul.f32 %v569, %v571
      %v574 = vmul.f32 %v569, %v572
      %575 = vset.pattern.permute.xlu0 3
      %576 = vperm.xlu0 %575, %v544
      %v577 = vpop.permute.xlu0 %576
      %v579 = vperm.slane %v498, 3
      %v580 = vperm.slane %v499, 3
      %v581 = vmul.f32 %v577, %v579
      %v582 = vmul.f32 %v577, %v580
      %v583 = vadd.f32 %v557, %v565
      %v584 = vadd.f32 %v558, %v566
      %v585 = vadd.f32 %v573, %v581
      %v586 = vadd.f32 %v574, %v582
      %v587 = vadd.f32 %v583, %v585
      %v588 = vadd.f32 %v584, %v586
      %590 = vset.pattern.permute.xlu0 0
      %591 = vperm.xlu0 %590, %v549
      %v592 = vpop.permute.xlu0 %591
      %v594 = vadd.f32 %v587, %v592
      %v595 = vadd.f32 %v588, %v592
      %v596 = vmul.f32 %v594, 0.5
      %v597 = vmul.f32 %v595, 0.5
      %v598 = vmul.f32 %v594, 0.70710677
      %v599 = vmul.f32 %v595, 0.70710677
      %v600 = vmul.f32 %v598, %v598
      %v601 = vmin.f32 16.0, %v600
      %v602 = vmul.f32 %v601, 2.1237322e-06
      %v603 = vadd.f32 %v602, 0.00028619796
      %v604 = vmul.f32 %v601, %v603
      %v605 = vadd.f32 %v604, 0.0036580483
      %v606 = vmul.f32 %v601, %v605
      %v607 = vadd.f32 %v606, 0.05243302
      %v608 = vmul.f32 %v601, %v607
      %v609 = vadd.f32 %v608, 0.18741608
      %v610 = vmul.f32 %v601, %v609
      %v611 = vadd.f32 %v610, 1.1283791
      %v612 = vmul.f32 %v598, %v611
      %v613 = vmul.f32 %v601, 3.8918573e-05
      %v614 = vadd.f32 %v613, 0.001143296
      %v615 = vmul.f32 %v601, %v614
      %v616 = vadd.f32 %v615, 0.014752088
      %v617 = vmul.f32 %v601, %v616
      %v618 = vadd.f32 %v617, 0.112945676
      %v619 = vmul.f32 %v601, %v618
      %v620 = vadd.f32 %v619, 0.4994258
      %v621 = vmul.f32 %v601, %v620
      %v622 = vadd.f32 %v621, 1.0
      %v623 = vrcp.pop %v622
      %v624 = vmul.f32 %v622, %v623
      %v625 = vsub.f32 1.0, %v624
      %v626 = vmul.f32 %v623, %v625
      %v627 = vadd.f32 %v623, %v626
      %vm628 = vweird.f32 %v622
      %vm629 = vweird.f32 %v623
      %vm630 = vmor %vm628, %vm629
      %v631 = vsel %vm630, %v623, %v627
      %v632 = vand.u32 2147483647, %v622
      %vm633 = vcmp.eq.f32.partialorder %v632, 8.507059e+37
      %v634 = vand.u32 %v622, 2147483648
      %v635 = vor.u32 1.1754944e-38, %v634
      %v636 = vsel %vm633, %v635, %v631
      %v637 = vmul.f32 %v612, %v636
      %v638 = vmin.f32 %v637, 1.0
      %v639 = vmax.f32 %v638, -1.0
      %v640 = vmul.f32 %v599, %v599
      %v641 = vmin.f32 16.0, %v640
      %v642 = vmul.f32 %v641, 2.1237322e-06
      %v643 = vadd.f32 %v642, 0.00028619796
      %v644 = vmul.f32 %v641, %v643
      %v645 = vadd.f32 %v644, 0.0036580483
      %v646 = vmul.f32 %v641, %v645
      %v647 = vadd.f32 %v646, 0.05243302
      %v648 = vmul.f32 %v641, %v647
      %v649 = vadd.f32 %v648, 0.18741608
      %v650 = vmul.f32 %v641, %v649
      %v651 = vadd.f32 %v650, 1.1283791
      %v652 = vmul.f32 %v599, %v651
      %v653 = vmul.f32 %v641, 3.8918573e-05
      %v654 = vadd.f32 %v653, 0.001143296
      %v655 = vmul.f32 %v641, %v654
      %v656 = vadd.f32 %v655, 0.014752088
      %v657 = vmul.f32 %v641, %v656
      %v658 = vadd.f32 %v657, 0.112945676
      %v659 = vmul.f32 %v641, %v658
      %v660 = vadd.f32 %v659, 0.4994258
      %v661 = vmul.f32 %v641, %v660
      %v662 = vadd.f32 %v661, 1.0
      %v663 = vrcp.pop %v662
      %v664 = vmul.f32 %v662, %v663
      %v665 = vsub.f32 1.0, %v664
      %v666 = vmul.f32 %v663, %v665
      %v667 = vadd.f32 %v663, %v666
      %vm668 = vweird.f32 %v662
      %vm669 = vweird.f32 %v663
      %vm670 = vmor %vm668, %vm669
      %v671 = vsel %vm670, %v663, %v667
      %v672 = vand.u32 2147483647, %v662
      %vm673 = vcmp.eq.f32.partialorder %v672, 8.507059e+37
      %v674 = vand.u32 %v662, 2147483648
      %v675 = vor.u32 1.1754944e-38, %v674
      %v676 = vsel %vm673, %v675, %v671
      %v677 = vmul.f32 %v652, %v676
      %v678 = vmin.f32 %v677, 1.0
      %v679 = vmax.f32 %v678, -1.0
      %v680 = vadd.f32 %v639, 1.0
      %v681 = vadd.f32 %v679, 1.0
      %v682 = vmul.f32 %v596, %v680
      %v683 = vmul.f32 %v597, %v681
      %v684 = vadd.f32 %v498, %v682
      %v685 = vadd.f32 %v499, %v683
      %v688 = vrot.slane %v685, 4
      %v689 = vsel %vm286, %v684, %v688
      %691 = vst [vmem:[%s268] sm:$0xff] %v689
      %p692 = scmp.lt.s32.totalorder %s17, 3
      %s693 = scalar_select %p692, %s17, 3
      %s694 = smul.addr %s693, 2
      %s695 = smul.addr %s694, 4
      %s696 = scalar_lea.vmem %s6, %s695
      // Predicated region
      $region45: #{block_forward.1} parent=43 // pred_check
        %p697 = pneg %p171
      $region46: #{block_forward.1} parent=43 // pred_check_branch
        %699 = sbr.rel (%p697) target = $region48
      $region47: #{block_forward.1} parent=43 // pred_region
        _
      $region48: #{block_forward.1} parent=43 // pred_fallthru
        _
    $region44: #{block_forward.1} parent=5 // pred_fallthru
      _
    %p700 = scmp.le.s32.totalorder 2, %s12
    // Predicated region
    $region49: #{block_forward.1} parent=5 // pred_check
      %p701 = pneg %p700
    $region50: #{block_forward.1} parent=5 // pred_check_branch
      %703 = sbr.rel (%p701) target = $region52
    $region51: #{block_forward.1} parent=5 // pred_region
      %s704 = ssub.s32 %s12, 2
      // Predicated region
      $region53: #{block_forward.1} parent=51 // pred_check
        %p705 = pneg %p177
      $region54: #{block_forward.1} parent=51 // pred_check_branch
        %707 = sbr.rel (%p705) target = $region56
      $region55: #{block_forward.1} parent=51 // pred_region
        %p708 = scmp.lt.s32.totalorder %s18, 3
        %s709 = scalar_select %p708, %s18, 3
        %s710 = smul.addr %s709, 2
        %s711 = smul.addr %s710, 4
        %s712 = scalar_lea.vmem %s6, %s711
      $region56: #{block_forward.1} parent=51 // pred_fallthru
        _
    $region52: #{block_forward.1} parent=5 // pred_fallthru
      _
  $region6: #{block_forward.1} parent=0 // loop_footer
    %s16 = sadd.s32 1, %s12
  $region7: #{block_forward.1} parent=0 // loop_footer_branch
    %11 = sbr.rel target = $region3
  $region8: #{block_forward.1} parent=0 // loop_exit
    _

</llo_original>
